<compile_context>
chip_gen: v7x
topology: tpu7x:2x2x1
jax: 0.10.0
libtpu: 0.0.40
codegen_flags: <defaults>
</compile_context>

<pallas_src>
import functools
import math

import jax
import jax.numpy as jnp
from jax.experimental import pallas as pl
from jax.experimental.pallas import tpu as pltpu


HEAD_W = 128   # lane-dense output slab width (one full vreg lane width)
TILE_B = 1024  # batch tile (multiple of 8); amortizes per-grid-step overhead


def _policy_kernel(bf16_act,
                   x_ref, w1_ref, b1_ref, w2_ref, b2_ref, wh_ref, bh_ref,
                   out_ref):
    """Fused MLPBase forward + DiagGaussian head: 3 MXU matmuls total."""
    x = x_ref[...].astype(jnp.bfloat16)                              # (tb, num_inputs)

    # layer 1: [critic | actor] weights fused along the lane dim -> (tb, 2H)
    z1 = jnp.dot(x, w1_ref[...], preferred_element_type=jnp.float32)
    if bf16_act:
        h1 = jnp.tanh(z1.astype(jnp.bfloat16) + b1_ref[...].astype(jnp.bfloat16))
    else:
        h1 = jnp.tanh(z1 + b1_ref[...]).astype(jnp.bfloat16)

    # layer 2: block-diagonal (2H, 2H) == one native 128x128 MXU tile
    z2 = jnp.dot(h1, w2_ref[...], preferred_element_type=jnp.float32)
    if bf16_act:
        h2 = jnp.tanh(z2.astype(jnp.bfloat16) + b2_ref[...].astype(jnp.bfloat16))
    else:
        h2 = jnp.tanh(z2 + b2_ref[...]).astype(jnp.bfloat16)

    # fused heads: value col 0, action mean cols 1..A, log-prob constant (folded
    # into the bias; its weight column is zero) at col A+1, rest zero-padded.
    head = jnp.dot(h2, wh_ref[...], preferred_element_type=jnp.float32) + bh_ref[...]
    out_ref[...] = head.astype(out_ref.dtype)


# ----------------------------- parameters --------------------------------- #

def init_normc(key, in_dim, out_dim):
    """init_normc_: normal(0,1) then normalize each PyTorch (out,in) row.

    Stored transposed as (in, out), so normalize over axis 0."""
    w = jax.random.normal(key, (in_dim, out_dim), dtype=jnp.float32)
    return w / jnp.sqrt(jnp.sum(w * w, axis=0, keepdims=True))


def make_params(key, num_inputs, hidden_size, num_outputs):
    ks = jax.random.split(key, 6)
    return dict(
        # critic MLP + critic_linear
        w1c=init_normc(ks[0], num_inputs, hidden_size),
        b1c=jnp.zeros((hidden_size,), jnp.float32),
        w2c=init_normc(ks[1], hidden_size, hidden_size),
        b2c=jnp.zeros((hidden_size,), jnp.float32),
        wv=init_normc(ks[2], hidden_size, 1),
        bv=jnp.zeros((1,), jnp.float32),
        # actor MLP + DiagGaussian fc_mean
        w1a=init_normc(ks[3], num_inputs, hidden_size),
        b1a=jnp.zeros((hidden_size,), jnp.float32),
        w2a=init_normc(ks[4], hidden_size, hidden_size),
        b2a=jnp.zeros((hidden_size,), jnp.float32),
        wm=init_normc(ks[5], hidden_size, num_outputs),
        bm=jnp.zeros((num_outputs,), jnp.float32),
        # DiagGaussian logstd (AddBias, zero-initialized)
        logstd=jnp.zeros((num_outputs,), jnp.float32),
    )


def pack_params(p):
    """Fuse critic/actor/head weights into the three 128-wide bf16 matmul operands."""
    num_inputs, hidden = p["w1c"].shape
    num_outputs = p["wm"].shape[1]
    h2 = 2 * hidden
    assert num_outputs + 2 <= HEAD_W, "action dim too large for one 128-lane head slab"

    w1 = jnp.concatenate([p["w1c"], p["w1a"]], axis=1)               # (in, 2H)
    b1 = jnp.concatenate([p["b1c"], p["b1a"]])[None, :]              # (1, 2H)

    w2 = jnp.zeros((h2, h2), jnp.float32)
    w2 = w2.at[:hidden, :hidden].set(p["w2c"])
    w2 = w2.at[hidden:, hidden:].set(p["w2a"])                       # block-diagonal
    b2 = jnp.concatenate([p["b2c"], p["b2a"]])[None, :]

    wh = jnp.zeros((h2, HEAD_W), jnp.float32)
    wh = wh.at[:hidden, 0:1].set(p["wv"])                            # value column
    wh = wh.at[hidden:, 1:1 + num_outputs].set(p["wm"])              # mean columns
    bh = jnp.zeros((1, HEAD_W), jnp.float32)
    bh = bh.at[0, 0].set(p["bv"][0])
    bh = bh.at[0, 1:1 + num_outputs].set(p["bm"])

    # Deterministic DiagGaussian log-prob at the mode (action == mean):
    #   sum_i log N(mean_i | mean_i, std_i) = -sum(logstd) - A/2 * log(2*pi)
    # Folded into the head bias (weight column A+1 is zero -> output == bias).
    lp = -jnp.sum(p["logstd"]) - 0.5 * num_outputs * math.log(2.0 * math.pi)
    bh = bh.at[0, 1 + num_outputs].set(lp)

    return dict(
        w1=w1.astype(jnp.bfloat16), b1=b1,
        w2=w2.astype(jnp.bfloat16), b2=b2,
        wh=wh.astype(jnp.bfloat16), bh=bh,
        num_inputs=num_inputs, hidden=hidden, num_outputs=num_outputs,
    )


# ------------------------------- wrapper ----------------------------------- #

def _round_up(n, m):
    return ((n + m - 1) // m) * m


def policy_act(x, masks, fused, deterministic=True):
    """Equivalent of Policy.act (Box action space / DiagGaussian head).

    Returns (value [B,1], action [B,A], action_log_probs [B,1]) in f32.
    masks is unused by MLPBase.forward (no recurrence); kept for parity."""
    # TODO(synk): stochastic sampling path (dist.sample()) not implemented; deterministic only.
    del masks, deterministic
    B, num_inputs = x.shape
    h2 = 2 * fused["hidden"]
    A = fused["num_outputs"]

    # Batch tiling: never a single giant block for big batches. Pad B up to a
    # multiple of the tile and use a cdiv-style grid so v7x can shard the
    # batch axis across both TensorCores; small batches stay one small tile.
    tb = min(TILE_B, _round_up(B, 8))
    B_pad = _round_up(B, tb)
    grid = (B_pad // tb,)
    if B_pad != B:
        x = jnp.pad(x, ((0, B_pad - B), (0, 0)))

    # bf16 bias-add/tanh only where the VPU/EUP have bf16 paths (v6e / v7x).
    kind = jax.devices()[0].device_kind.lower()
    bf16_act = ("v6" in kind) or ("v7" in kind)

    def full(shape):
        return pl.BlockSpec(shape, lambda i: (0, 0))

    weight_bytes = 2 * (num_inputs * h2 + h2 * h2 + h2 * HEAD_W) + 4 * (h2 + h2 + HEAD_W)
    cost = pl.CostEstimate(
        flops=2 * B_pad * (num_inputs * h2 + h2 * h2 + h2 * HEAD_W),
        transcendentals=2 * B_pad * h2,
        bytes_accessed=B_pad * num_inputs * 4 + B_pad * HEAD_W * 2 + weight_bytes,
    )

    out = pl.pallas_call(
        functools.partial(_policy_kernel, bf16_act),
        out_shape=jax.ShapeDtypeStruct((B_pad, HEAD_W), jnp.bfloat16),
        grid=grid,
        in_specs=[
            pl.BlockSpec((tb, num_inputs), lambda i: (i, 0)),        # x
            full((num_inputs, h2)), full((1, h2)),                   # w1, b1
            full((h2, h2)), full((1, h2)),                           # w2, b2
            full((h2, HEAD_W)), full((1, HEAD_W)),                   # wh, bh (log-prob folded in)
        ],
        out_specs=pl.BlockSpec((tb, HEAD_W), lambda i: (i, 0)),
        compiler_params=pltpu.CompilerParams(
            dimension_semantics=("parallel",)),
        cost_estimate=cost,
    )(x, fused["w1"], fused["b1"], fused["w2"], fused["b2"],
      fused["wh"], fused["bh"])

    out = out[:B].astype(jnp.float32)
    value = out[:, 0:1]
    action = out[:, 1:1 + A]
    action_log_probs = out[:, 1 + A:2 + A]
    return value, action, action_log_probs


# ------------------------------ reference ---------------------------------- #

def reference_forward(x, p):
    """Pure-JAX f32 reference of MLPBase + fc_mean (unfused weights)."""
    hc = jnp.tanh(x @ p["w1c"] + p["b1c"])
    hc = jnp.tanh(hc @ p["w2c"] + p["b2c"])
    value = hc @ p["wv"] + p["bv"]
    ha = jnp.tanh(x @ p["w1a"] + p["b1a"])
    ha = jnp.tanh(ha @ p["w2a"] + p["b2a"])
    mean = ha @ p["wm"] + p["bm"]
    return value, mean


if __name__ == "__main__":
    key = jax.random.PRNGKey(0)
    k_x, k_p = jax.random.split(key)

    batch = 8
    num_inputs = 32       # obs_shape[0]
    hidden_size = 64      # MLPBase default -> fused hidden = 128 (one MXU tile)
    num_outputs = 6       # Box action space dim

    x = jax.random.normal(k_x, (batch, num_inputs), dtype=jnp.float32)
    masks = jnp.ones((batch, 1), jnp.float32)
    params = make_params(k_p, num_inputs, hidden_size, num_outputs)
    fused = pack_params(params)

    value, action, action_log_probs = policy_act(x, masks, fused, deterministic=True)
    jax.block_until_ready((value, action, action_log_probs))

    # correctness checks (bf16 MXU operands + bf16 output slab -> loose tolerance vs f32 ref)
    ref_value, ref_mean = reference_forward(x, params)
    assert value.shape == (batch, 1)
    assert action.shape == (batch, num_outputs)
    assert action_log_probs.shape == (batch, 1)
    assert jnp.allclose(value, ref_value, atol=5e-2, rtol=5e-2)
    assert jnp.allclose(action, ref_mean, atol=5e-2, rtol=5e-2)
    ref_lp = -jnp.sum(params["logstd"]) - 0.5 * num_outputs * math.log(2.0 * math.pi)
    assert jnp.allclose(action_log_probs, ref_lp, atol=5e-2, rtol=5e-2)

    print("KERNEL_OK")
</pallas_src>

<mosaic_0001>
module attributes {stable_mosaic.version = 11 : i64} {
  func.func @_policy_kernel(%arg0: i32, %arg1: memref<8x32xf32, #tpu.memory_space<vmem>>, %arg2: memref<32x128xbf16, #tpu.memory_space<vmem>>, %arg3: memref<1x128xf32, #tpu.memory_space<vmem>>, %arg4: memref<128x128xbf16, #tpu.memory_space<vmem>>, %arg5: memref<1x128xf32, #tpu.memory_space<vmem>>, %arg6: memref<128x128xbf16, #tpu.memory_space<vmem>>, %arg7: memref<1x128xf32, #tpu.memory_space<vmem>>, %arg8: memref<8x128xbf16, #tpu.memory_space<vmem>>) attributes {dimension_semantics = [#tpu.dimension_semantics<parallel>], iteration_bounds = array<i64: 1>, scalar_prefetch = 0 : i64, scratch_operands = 0 : i64, tpu.core_type = #tpu.core_type<tc>, window_params = [{transform_indices = @transform_0, window_bounds = array<i64: 8, 32>}, {pipeline_mode = #tpu.pipeline_mode<synchronous>, transform_indices = @transform_1, window_bounds = array<i64: 32, 128>}, {pipeline_mode = #tpu.pipeline_mode<synchronous>, transform_indices = @transform_2, window_bounds = array<i64: 1, 128>}, {pipeline_mode = #tpu.pipeline_mode<synchronous>, transform_indices = @transform_3, window_bounds = array<i64: 128, 128>}, {pipeline_mode = #tpu.pipeline_mode<synchronous>, transform_indices = @transform_4, window_bounds = array<i64: 1, 128>}, {pipeline_mode = #tpu.pipeline_mode<synchronous>, transform_indices = @transform_5, window_bounds = array<i64: 128, 128>}, {pipeline_mode = #tpu.pipeline_mode<synchronous>, transform_indices = @transform_6, window_bounds = array<i64: 1, 128>}, {transform_indices = @transform_7, window_bounds = array<i64: 8, 128>}]} {
    %c0 = arith.constant 0 : index
    %c0_0 = arith.constant 0 : index
    %0 = vector.load %arg1[%c0, %c0_0] : memref<8x32xf32, #tpu.memory_space<vmem>>, vector<8x32xf32>
    %1 = arith.truncf %0 : vector<8x32xf32> to vector<8x32xbf16>
    %c0_1 = arith.constant 0 : index
    %c0_2 = arith.constant 0 : index
    %2 = vector.load %arg2[%c0_1, %c0_2] : memref<32x128xbf16, #tpu.memory_space<vmem>>, vector<32x128xbf16>
    %cst = arith.constant dense<0.000000e+00> : vector<8x128xf32>
    %3 = tpu.matmul %1, %2, %cst {dimension_numbers = #tpu.dot_dimension_numbers<[1], [0], [0], [1], [0, 0, 1, 1], [], []>} : vector<8x32xbf16>, vector<32x128xbf16>, vector<8x128xf32> -> vector<8x128xf32>
    %c0_3 = arith.constant 0 : index
    %c0_4 = arith.constant 0 : index
    %4 = vector.load %arg3[%c0_3, %c0_4] : memref<1x128xf32, #tpu.memory_space<vmem>>, vector<1x128xf32>
    %5 = vector.broadcast %4 : vector<1x128xf32> to vector<8x128xf32>
    %6 = arith.addf %3, %5 : vector<8x128xf32>
    %7 = math.tanh %6 : vector<8x128xf32>
    %8 = arith.truncf %7 : vector<8x128xf32> to vector<8x128xbf16>
    %c0_5 = arith.constant 0 : index
    %c0_6 = arith.constant 0 : index
    %9 = vector.load %arg4[%c0_5, %c0_6] : memref<128x128xbf16, #tpu.memory_space<vmem>>, vector<128x128xbf16>
    %cst_7 = arith.constant dense<0.000000e+00> : vector<8x128xf32>
    %10 = tpu.matmul %8, %9, %cst_7 {dimension_numbers = #tpu.dot_dimension_numbers<[1], [0], [0], [1], [0, 0, 1, 1], [], []>} : vector<8x128xbf16>, vector<128x128xbf16>, vector<8x128xf32> -> vector<8x128xf32>
    %c0_8 = arith.constant 0 : index
    %c0_9 = arith.constant 0 : index
    %11 = vector.load %arg5[%c0_8, %c0_9] : memref<1x128xf32, #tpu.memory_space<vmem>>, vector<1x128xf32>
    %12 = vector.broadcast %11 : vector<1x128xf32> to vector<8x128xf32>
    %13 = arith.addf %10, %12 : vector<8x128xf32>
    %14 = math.tanh %13 : vector<8x128xf32>
    %15 = arith.truncf %14 : vector<8x128xf32> to vector<8x128xbf16>
    %c0_10 = arith.constant 0 : index
    %c0_11 = arith.constant 0 : index
    %16 = vector.load %arg6[%c0_10, %c0_11] : memref<128x128xbf16, #tpu.memory_space<vmem>>, vector<128x128xbf16>
    %cst_12 = arith.constant dense<0.000000e+00> : vector<8x128xf32>
    %17 = tpu.matmul %15, %16, %cst_12 {dimension_numbers = #tpu.dot_dimension_numbers<[1], [0], [0], [1], [0, 0, 1, 1], [], []>} : vector<8x128xbf16>, vector<128x128xbf16>, vector<8x128xf32> -> vector<8x128xf32>
    %c0_13 = arith.constant 0 : index
    %c0_14 = arith.constant 0 : index
    %18 = vector.load %arg7[%c0_13, %c0_14] : memref<1x128xf32, #tpu.memory_space<vmem>>, vector<1x128xf32>
    %19 = vector.broadcast %18 : vector<1x128xf32> to vector<8x128xf32>
    %20 = arith.addf %17, %19 : vector<8x128xf32>
    %21 = arith.truncf %20 : vector<8x128xf32> to vector<8x128xbf16>
    %c0_15 = arith.constant 0 : index
    %c0_16 = arith.constant 0 : index
    %22 = vector.load %arg8[%c0_15, %c0_16] : memref<8x128xbf16, #tpu.memory_space<vmem>>, vector<8x128xbf16>
    tpu.vector_store %arg8[%c0_15, %c0_16], %21 {strides = array<i32>} : memref<8x128xbf16, #tpu.memory_space<vmem>>, vector<8x128xbf16>,
    return
  }
  func.func @transform_0(%arg0: i32) -> (i32, i32) {
    %c0_i32 = arith.constant 0 : i32
    %c0_i32_0 = arith.constant 0 : i32
    return %arg0, %c0_i32 : i32, i32
  }
  func.func @transform_1(%arg0: i32) -> (i32, i32) {
    %c0_i32 = arith.constant 0 : i32
    %c0_i32_0 = arith.constant 0 : i32
    %c0_i32_1 = arith.constant 0 : i32
    return %c0_i32, %c0_i32_0 : i32, i32
  }
  func.func @transform_2(%arg0: i32) -> (i32, i32) {
    %c0_i32 = arith.constant 0 : i32
    %c0_i32_0 = arith.constant 0 : i32
    %c0_i32_1 = arith.constant 0 : i32
    return %c0_i32, %c0_i32_0 : i32, i32
  }
  func.func @transform_3(%arg0: i32) -> (i32, i32) {
    %c0_i32 = arith.constant 0 : i32
    %c0_i32_0 = arith.constant 0 : i32
    %c0_i32_1 = arith.constant 0 : i32
    return %c0_i32, %c0_i32_0 : i32, i32
  }
  func.func @transform_4(%arg0: i32) -> (i32, i32) {
    %c0_i32 = arith.constant 0 : i32
    %c0_i32_0 = arith.constant 0 : i32
    %c0_i32_1 = arith.constant 0 : i32
    return %c0_i32, %c0_i32_0 : i32, i32
  }
  func.func @transform_5(%arg0: i32) -> (i32, i32) {
    %c0_i32 = arith.constant 0 : i32
    %c0_i32_0 = arith.constant 0 : i32
    %c0_i32_1 = arith.constant 0 : i32
    return %c0_i32, %c0_i32_0 : i32, i32
  }
  func.func @transform_6(%arg0: i32) -> (i32, i32) {
    %c0_i32 = arith.constant 0 : i32
    %c0_i32_0 = arith.constant 0 : i32
    %c0_i32_1 = arith.constant 0 : i32
    return %c0_i32, %c0_i32_0 : i32, i32
  }
  func.func @transform_7(%arg0: i32) -> (i32, i32) {
    %c0_i32 = arith.constant 0 : i32
    %c0_i32_0 = arith.constant 0 : i32
    return %arg0, %c0_i32 : i32, i32
  }
}

</mosaic_0001>

<llo_original>
// kernel: tpu_custom_call.1
$region0: #{tpu_custom_call.1}
  #allocation0 [shape = 'u32[]', space=smem, size = 0x4, offset = 0x4, fixed_abs, tag = 'smem constant byte address 0x4 - core index']
  #allocation1 [shape = 'u32[144,128]{1,0:T(1,128)}', space=vmem, size = 0x12000, scoped, tag = 'internal scratch']
  %s0 = inlined_call_operand.hbm [shape: f32[8,32], index: 0, kind: input, shape index: {}]
  %s1 = inlined_call_operand.hbm [shape: bf16[32,128], index: 1, kind: input, shape index: {}]
  %s2 = inlined_call_operand.vmem [shape: f32[1,128], index: 2, kind: input, shape index: {}]
  %s3 = inlined_call_operand.hbm [shape: bf16[128,128], index: 3, kind: input, shape index: {}]
  %s4 = inlined_call_operand.vmem [shape: f32[1,128], index: 4, kind: input, shape index: {}]
  %s5 = inlined_call_operand.hbm [shape: bf16[128,128], index: 5, kind: input, shape index: {}]
  %s6 = inlined_call_operand.vmem [shape: f32[1,128], index: 6, kind: input, shape index: {}]
  %s7 = inlined_call_operand.hbm [shape: bf16[8,128], index: 7, kind: output, shape index: {}]
  %s8 = sld [smem:[#allocation0]]
  $region54: #{tpu_custom_call.1} parent=0
    _
  %s10 = ssub.s32 1, %s8
  %s11 = scalar_select 0, %s10, %s8
  $region1: #{tpu_custom_call.1} parent=0
    #allocation2 [shape = 'u8[4096]{0}', space=vmem, size = 0x1000, scoped, tag = 'input window, operand 0, single buffered']
    #allocation3 [shape = 's32[1]{0}', space=sflag, size = 0x4, scoped, tag = 'scoped memory for tpu_custom_call.1']
    #allocation4 [shape = 's32[1]{0}', space=sflag, size = 0x4, scoped, tag = 'scoped memory for tpu_custom_call.1']
    #allocation5 [shape = 'u8[8192]{0}', space=vmem, size = 0x2000, scoped, tag = 'input window, operand 1, single buffered']
    #allocation6 [shape = 's32[1]{0}', space=sflag, size = 0x4, scoped, tag = 'scoped memory for tpu_custom_call.1']
    #allocation7 [shape = 'u8[32768]{0}', space=vmem, size = 0x8000, scoped, tag = 'input window, operand 3, single buffered']
    #allocation8 [shape = 'u8[32768]{0}', space=vmem, size = 0x8000, scoped, tag = 'input window, operand 5, single buffered']
    #allocation9 [shape = 's32[1]{0}', space=sflag, size = 0x4, scoped, tag = 'scoped memory for tpu_custom_call.1']
    #allocation10 [shape = 'u8[2048]{0}', space=vmem, size = 0x800, scoped, tag = 'output window, operand 0, single buffered']
    %12 = vsyncpa [#allocation3], 0
    %13 = vsyncpa [#allocation6], 0
    %14 = vsyncpa [#allocation9], 0
    %15 = vsyncpa [#allocation4], 0
    // Predicated region
    $region2: #{tpu_custom_call.1} parent=1 // pred_check
      _
    $region3: #{tpu_custom_call.1} parent=1 // pred_check_branch
      %17 = sbr.rel (0) target = $region5
    $region4: #{tpu_custom_call.1} parent=1 // pred_region
      %s19 = ssub.s32 128, 128
      %20 = vsyncadd [#allocation3], %s19
      %s22 = sshll.u32 [#allocation2], 4
      %s23 = int_to_ptr.vmem [resolvable:$true] %s22
      %25 = dma.hbm_to_vmem [thread:$0]  %s0, 128, %s23, [#allocation3]
    $region5: #{tpu_custom_call.1} parent=1 // pred_fallthru
      _
    // Predicated region
    $region6: #{tpu_custom_call.1} parent=1 // pred_check
      _
    $region7: #{tpu_custom_call.1} parent=1 // pred_check_branch
      %27 = sbr.rel (0) target = $region9
    $region8: #{tpu_custom_call.1} parent=1 // pred_region
      %s29 = ssub.s32 256, 256
      %30 = vsyncadd [#allocation6], %s29
      %s31 = sshll.u32 [#allocation5], 4
      %s32 = int_to_ptr.vmem [resolvable:$true] %s31
      %37 = dma.hbm_to_vmem [thread:$0]  %s1, 256, %s32, [#allocation6], 64, 64, 4
    $region9: #{tpu_custom_call.1} parent=1 // pred_fallthru
      _
    // Predicated region
    $region10: #{tpu_custom_call.1} parent=1 // pred_check
      _
    $region11: #{tpu_custom_call.1} parent=1 // pred_check_branch
      %39 = sbr.rel (0) target = $region13
    $region12: #{tpu_custom_call.1} parent=1 // pred_region
      _
    $region13: #{tpu_custom_call.1} parent=1 // pred_fallthru
      _
    // Predicated region
    $region14: #{tpu_custom_call.1} parent=1 // pred_check
      _
    $region15: #{tpu_custom_call.1} parent=1 // pred_check_branch
      %41 = sbr.rel (0) target = $region17
    $region16: #{tpu_custom_call.1} parent=1 // pred_region
      %s43 = ssub.s32 1024, 1024
      %44 = vsyncadd [#allocation6], %s43
      %s45 = sshll.u32 [#allocation7], 4
      %s46 = int_to_ptr.vmem [resolvable:$true] %s45
      %51 = dma.hbm_to_vmem [thread:$0]  %s3, 1024, %s46, [#allocation6], 64, 64, 4
    $region17: #{tpu_custom_call.1} parent=1 // pred_fallthru
      _
    // Predicated region
    $region18: #{tpu_custom_call.1} parent=1 // pred_check
      _
    $region19: #{tpu_custom_call.1} parent=1 // pred_check_branch
      %53 = sbr.rel (0) target = $region21
    $region20: #{tpu_custom_call.1} parent=1 // pred_region
      _
    $region21: #{tpu_custom_call.1} parent=1 // pred_fallthru
      _
    // Predicated region
    $region22: #{tpu_custom_call.1} parent=1 // pred_check
      _
    $region23: #{tpu_custom_call.1} parent=1 // pred_check_branch
      %55 = sbr.rel (0) target = $region25
    $region24: #{tpu_custom_call.1} parent=1 // pred_region
      %s57 = ssub.s32 1024, 1024
      %58 = vsyncadd [#allocation9], %s57
      %s59 = sshll.u32 [#allocation8], 4
      %s60 = int_to_ptr.vmem [resolvable:$true] %s59
      %65 = dma.hbm_to_vmem [thread:$0]  %s5, 1024, %s60, [#allocation9], 64, 64, 4
    $region25: #{tpu_custom_call.1} parent=1 // pred_fallthru
      _
    // Predicated region
    $region26: #{tpu_custom_call.1} parent=1 // pred_check
      _
    $region27: #{tpu_custom_call.1} parent=1 // pred_check_branch
      %67 = sbr.rel (0) target = $region29
    $region28: #{tpu_custom_call.1} parent=1 // pred_region
      _
    $region29: #{tpu_custom_call.1} parent=1 // pred_fallthru
      _
    // Predicated region
    $region30: #{tpu_custom_call.1} parent=1 // pred_check
      _
    $region31: #{tpu_custom_call.1} parent=1 // pred_check_branch
      %69 = sbr.rel (0) target = $region33
    $region32: #{tpu_custom_call.1} parent=1 // pred_region
      %70 = dma.done [#allocation3], 128
    $region33: #{tpu_custom_call.1} parent=1 // pred_fallthru
      _
    // Predicated region
    $region34: #{tpu_custom_call.1} parent=1 // pred_check
      _
    $region35: #{tpu_custom_call.1} parent=1 // pred_check_branch
      %72 = sbr.rel (0) target = $region37
    $region36: #{tpu_custom_call.1} parent=1 // pred_region
      %73 = dma.done [#allocation6], 256
    $region37: #{tpu_custom_call.1} parent=1 // pred_fallthru
      _
    // Predicated region
    $region38: #{tpu_custom_call.1} parent=1 // pred_check
      _
    $region39: #{tpu_custom_call.1} parent=1 // pred_check_branch
      %75 = sbr.rel (0) target = $region41
    $region40: #{tpu_custom_call.1} parent=1 // pred_region
      %76 = dma.done [#allocation6], 1024
    $region41: #{tpu_custom_call.1} parent=1 // pred_fallthru
      _
    // Predicated region
    $region42: #{tpu_custom_call.1} parent=1 // pred_check
      _
    $region43: #{tpu_custom_call.1} parent=1 // pred_check_branch
      %78 = sbr.rel (0) target = $region45
    $region44: #{tpu_custom_call.1} parent=1 // pred_region
      %79 = dma.done [#allocation9], 1024
    $region45: #{tpu_custom_call.1} parent=1 // pred_fallthru
      _
    %v81 = vld [vmem:[#allocation2] sm:$0xff]
    %v82 = vpack.c.bf16 %v81, %v81
    %v83 = vld [vmem:[#allocation5] sm:$0xf]
    %v84 = vld [vmem:[#allocation5 + $0x4] sm:$0xf]
    %v85 = vld [vmem:[#allocation5 + $0x8] sm:$0xf]
    %v86 = vld [vmem:[#allocation5 + $0xc] sm:$0xf]
    %v87 = vld [vmem:[%s2] sm:$0x1]
    %v89 = vlaneseq
    %v90 = vshrl.u32 %v89, 7
    %v91 = vsub.s32 0, %v90
    %v92 = vrot.slane %v87, %v91
    %v98 = vunpack.c.l.b16 %v83
    %v99 = vunpack.c.l.b16 %v84
    %v100 = vunpack.c.l.b16 %v85
    %v101 = vunpack.c.l.b16 %v86
    %v102 = vpack.c.b16 %v99, %v98
    %v103 = vpack.c.b16 %v101, %v100
    %vm106 = vcmask 261120
    %v108 = vsel %vm106, %v82, 0
    %110 = vmatprep.subr.bf16.mxu0 0
    %111 = vmatpush1.bf16.msra.mxu0 %v102
    %112 = vmatprep.subr.bf16.mxu0 0
    %113 = vmatpush1.bf16.msra.mxu0 %v103
    %114 = vmatprep.subr.bf16.mxu0 0
    %115 = vmatpush1.bf16.msra.mxu0 0
    %116 = vmatprep.subr.bf16.mxu0 0
    %117 = vmatpush1.bf16.msra.mxu0 0
    %118 = vmatprep.subr.bf16.mxu0 0
    %119 = vmatpush1.bf16.msra.mxu0 0
    %120 = vmatprep.subr.bf16.mxu0 0
    %121 = vmatpush1.bf16.msra.mxu0 0
    %122 = vmatprep.subr.bf16.mxu0 0
    %123 = vmatpush1.bf16.msra.mxu0 0
    %124 = vmatprep.subr.bf16.mxu0 0
    %125 = vmatpush1.bf16.msra.mxu0 0
    %126 = vmatprep.subr.bf16.mxu0 0
    %127 = vmatpush1.bf16.msra.mxu0 0
    %128 = vmatprep.subr.bf16.mxu0 0
    %129 = vmatpush1.bf16.msra.mxu0 0
    %130 = vmatprep.subr.bf16.mxu0 0
    %131 = vmatpush1.bf16.msra.mxu0 0
    %132 = vmatprep.subr.bf16.mxu0 0
    %133 = vmatpush1.bf16.msra.mxu0 0
    %134 = vmatprep.subr.bf16.mxu0 0
    %135 = vmatpush1.bf16.msra.mxu0 0
    %136 = vmatprep.subr.bf16.mxu0 0
    %137 = vmatpush1.bf16.msra.mxu0 0
    %138 = vmatprep.subr.bf16.mxu0 0
    %139 = vmatpush1.bf16.msra.mxu0 0
    %140 = vmatprep.subr.bf16.mxu0 0
    %141 = vmatpush1.bf16.msra.mxu0 0
    %142 = vmatprep.mubr.bf16.mxu0 0
    %143 = vmatmul.mubr.bf16.gmra.mrb[0].mxu0 %v108
    %v144 = vpop.f32.mrb[0].mxu0
    %v145 = vadd.f32 %v92, %v144
    %v146 = vpop.f32.mrb[0].mxu0
    %v147 = vpop.f32.mrb[0].mxu0
    %v148 = vpop.f32.mrb[0].mxu0
    %149 = vdwg.mxu0
    %v150 = vtanh.pop %v145
    %v151 = vpack.c.bf16 %v150, %v150
    %v152 = vld [vmem:[#allocation7] sm:$0xf]
    %v153 = vld [vmem:[#allocation7 + $0x4] sm:$0xf]
    %v154 = vld [vmem:[#allocation7 + $0x8] sm:$0xf]
    %v155 = vld [vmem:[#allocation7 + $0xc] sm:$0xf]
    %v156 = vld [vmem:[#allocation7 + $0x10] sm:$0xf]
    %v157 = vld [vmem:[#allocation7 + $0x14] sm:$0xf]
    %v158 = vld [vmem:[#allocation7 + $0x18] sm:$0xf]
    %v159 = vld [vmem:[#allocation7 + $0x1c] sm:$0xf]
    %v160 = vld [vmem:[#allocation7 + $0x20] sm:$0xf]
    %v161 = vld [vmem:[#allocation7 + $0x24] sm:$0xf]
    %v162 = vld [vmem:[#allocation7 + $0x28] sm:$0xf]
    %v163 = vld [vmem:[#allocation7 + $0x2c] sm:$0xf]
    %v164 = vld [vmem:[#allocation7 + $0x30] sm:$0xf]
    %v165 = vld [vmem:[#allocation7 + $0x34] sm:$0xf]
    %v166 = vld [vmem:[#allocation7 + $0x38] sm:$0xf]
    %v167 = vld [vmem:[#allocation7 + $0x3c] sm:$0xf]
    %v168 = vld [vmem:[%s4] sm:$0x1]
    %v170 = vlaneseq
    %v171 = vshrl.u32 %v170, 7
    %v172 = vsub.s32 0, %v171
    %v173 = vrot.slane %v168, %v172
    %v191 = vunpack.c.l.b16 %v152
    %v192 = vunpack.c.l.b16 %v153
    %v193 = vunpack.c.l.b16 %v154
    %v194 = vunpack.c.l.b16 %v155
    %v195 = vunpack.c.l.b16 %v156
    %v196 = vunpack.c.l.b16 %v157
    %v197 = vunpack.c.l.b16 %v158
    %v198 = vunpack.c.l.b16 %v159
    %v199 = vunpack.c.l.b16 %v160
    %v200 = vunpack.c.l.b16 %v161
    %v201 = vunpack.c.l.b16 %v162
    %v202 = vunpack.c.l.b16 %v163
    %v203 = vunpack.c.l.b16 %v164
    %v204 = vunpack.c.l.b16 %v165
    %v205 = vunpack.c.l.b16 %v166
    %v206 = vunpack.c.l.b16 %v167
    %v207 = vpack.c.b16 %v192, %v191
    %v208 = vpack.c.b16 %v194, %v193
    %v209 = vpack.c.b16 %v196, %v195
    %v210 = vpack.c.b16 %v198, %v197
    %v211 = vpack.c.b16 %v200, %v199
    %v212 = vpack.c.b16 %v202, %v201
    %v213 = vpack.c.b16 %v204, %v203
    %v214 = vpack.c.b16 %v206, %v205
    %223 = vmatprep.subr.bf16.mxu0 0
    %224 = vmatpush1.bf16.msra.mxu0 %v207
    %225 = vmatprep.subr.bf16.mxu0 0
    %226 = vmatpush1.bf16.msra.mxu0 %v208
    %227 = vmatprep.subr.bf16.mxu0 0
    %228 = vmatpush1.bf16.msra.mxu0 %v209
    %229 = vmatprep.subr.bf16.mxu0 0
    %230 = vmatpush1.bf16.msra.mxu0 %v210
    %231 = vmatprep.subr.bf16.mxu0 0
    %232 = vmatpush1.bf16.msra.mxu0 %v211
    %233 = vmatprep.subr.bf16.mxu0 0
    %234 = vmatpush1.bf16.msra.mxu0 %v212
    %235 = vmatprep.subr.bf16.mxu0 0
    %236 = vmatpush1.bf16.msra.mxu0 %v213
    %237 = vmatprep.subr.bf16.mxu0 0
    %238 = vmatpush1.bf16.msra.mxu0 %v214
    %239 = vmatprep.subr.bf16.mxu0 0
    %240 = vmatpush1.bf16.msra.mxu0 0
    %241 = vmatprep.subr.bf16.mxu0 0
    %242 = vmatpush1.bf16.msra.mxu0 0
    %243 = vmatprep.subr.bf16.mxu0 0
    %244 = vmatpush1.bf16.msra.mxu0 0
    %245 = vmatprep.subr.bf16.mxu0 0
    %246 = vmatpush1.bf16.msra.mxu0 0
    %247 = vmatprep.subr.bf16.mxu0 0
    %248 = vmatpush1.bf16.msra.mxu0 0
    %249 = vmatprep.subr.bf16.mxu0 0
    %250 = vmatpush1.bf16.msra.mxu0 0
    %251 = vmatprep.subr.bf16.mxu0 0
    %252 = vmatpush1.bf16.msra.mxu0 0
    %253 = vmatprep.subr.bf16.mxu0 0
    %254 = vmatpush1.bf16.msra.mxu0 0
    %255 = vmatprep.mubr.bf16.mxu0 0
    %256 = vmatmul.mubr.bf16.gmra.mrb[0].mxu0 %v151
    %v257 = vpop.f32.mrb[0].mxu0
    %v258 = vadd.f32 %v173, %v257
    %v259 = vpop.f32.mrb[0].mxu0
    %v260 = vpop.f32.mrb[0].mxu0
    %v261 = vpop.f32.mrb[0].mxu0
    %262 = vdwg.mxu0
    %v263 = vtanh.pop %v258
    %v264 = vpack.c.bf16 %v263, %v263
    %v265 = vld [vmem:[#allocation8] sm:$0xf]
    %v266 = vld [vmem:[#allocation8 + $0x4] sm:$0xf]
    %v267 = vld [vmem:[#allocation8 + $0x8] sm:$0xf]
    %v268 = vld [vmem:[#allocation8 + $0xc] sm:$0xf]
    %v269 = vld [vmem:[#allocation8 + $0x10] sm:$0xf]
    %v270 = vld [vmem:[#allocation8 + $0x14] sm:$0xf]
    %v271 = vld [vmem:[#allocation8 + $0x18] sm:$0xf]
    %v272 = vld [vmem:[#allocation8 + $0x1c] sm:$0xf]
    %v273 = vld [vmem:[#allocation8 + $0x20] sm:$0xf]
    %v274 = vld [vmem:[#allocation8 + $0x24] sm:$0xf]
    %v275 = vld [vmem:[#allocation8 + $0x28] sm:$0xf]
    %v276 = vld [vmem:[#allocation8 + $0x2c] sm:$0xf]
    %v277 = vld [vmem:[#allocation8 + $0x30] sm:$0xf]
    %v278 = vld [vmem:[#allocation8 + $0x34] sm:$0xf]
    %v279 = vld [vmem:[#allocation8 + $0x38] sm:$0xf]
    %v280 = vld [vmem:[#allocation8 + $0x3c] sm:$0xf]
    %v281 = vld [vmem:[%s6] sm:$0x1]
    %v283 = vlaneseq
    %v284 = vshrl.u32 %v283, 7
    %v285 = vsub.s32 0, %v284
    %v286 = vrot.slane %v281, %v285
    %v304 = vunpack.c.l.b16 %v265
    %v305 = vunpack.c.l.b16 %v266
    %v306 = vunpack.c.l.b16 %v267
    %v307 = vunpack.c.l.b16 %v268
    %v308 = vunpack.c.l.b16 %v269
    %v309 = vunpack.c.l.b16 %v270
    %v310 = vunpack.c.l.b16 %v271
    %v311 = vunpack.c.l.b16 %v272
    %v312 = vunpack.c.l.b16 %v273
    %v313 = vunpack.c.l.b16 %v274
    %v314 = vunpack.c.l.b16 %v275
    %v315 = vunpack.c.l.b16 %v276
    %v316 = vunpack.c.l.b16 %v277
    %v317 = vunpack.c.l.b16 %v278
    %v318 = vunpack.c.l.b16 %v279
    %v319 = vunpack.c.l.b16 %v280
    %v320 = vpack.c.b16 %v305, %v304
    %v321 = vpack.c.b16 %v307, %v306
    %v322 = vpack.c.b16 %v309, %v308
    %v323 = vpack.c.b16 %v311, %v310
    %v324 = vpack.c.b16 %v313, %v312
    %v325 = vpack.c.b16 %v315, %v314
    %v326 = vpack.c.b16 %v317, %v316
    %v327 = vpack.c.b16 %v319, %v318
    %336 = vmatprep.subr.bf16.mxu0 0
    %337 = vmatpush1.bf16.msra.mxu0 %v320
    %338 = vmatprep.subr.bf16.mxu0 0
    %339 = vmatpush1.bf16.msra.mxu0 %v321
    %340 = vmatprep.subr.bf16.mxu0 0
    %341 = vmatpush1.bf16.msra.mxu0 %v322
    %342 = vmatprep.subr.bf16.mxu0 0
    %343 = vmatpush1.bf16.msra.mxu0 %v323
    %344 = vmatprep.subr.bf16.mxu0 0
    %345 = vmatpush1.bf16.msra.mxu0 %v324
    %346 = vmatprep.subr.bf16.mxu0 0
    %347 = vmatpush1.bf16.msra.mxu0 %v325
    %348 = vmatprep.subr.bf16.mxu0 0
    %349 = vmatpush1.bf16.msra.mxu0 %v326
    %350 = vmatprep.subr.bf16.mxu0 0
    %351 = vmatpush1.bf16.msra.mxu0 %v327
    %352 = vmatprep.subr.bf16.mxu0 0
    %353 = vmatpush1.bf16.msra.mxu0 0
    %354 = vmatprep.subr.bf16.mxu0 0
    %355 = vmatpush1.bf16.msra.mxu0 0
    %356 = vmatprep.subr.bf16.mxu0 0
    %357 = vmatpush1.bf16.msra.mxu0 0
    %358 = vmatprep.subr.bf16.mxu0 0
    %359 = vmatpush1.bf16.msra.mxu0 0
    %360 = vmatprep.subr.bf16.mxu0 0
    %361 = vmatpush1.bf16.msra.mxu0 0
    %362 = vmatprep.subr.bf16.mxu0 0
    %363 = vmatpush1.bf16.msra.mxu0 0
    %364 = vmatprep.subr.bf16.mxu0 0
    %365 = vmatpush1.bf16.msra.mxu0 0
    %366 = vmatprep.subr.bf16.mxu0 0
    %367 = vmatpush1.bf16.msra.mxu0 0
    %368 = vmatprep.mubr.bf16.mxu0 0
    %369 = vmatmul.mubr.bf16.gmra.mrb[0].mxu0 %v264
    %v370 = vpop.f32.mrb[0].mxu0
    %v371 = vadd.f32 %v286, %v370
    %v372 = vpop.f32.mrb[0].mxu0
    %v373 = vpop.f32.mrb[0].mxu0
    %v374 = vpop.f32.mrb[0].mxu0
    %375 = vdwg.mxu0
    %v376 = vpack.c.bf16 %v371, %v371
    %377 = vst [vmem:[#allocation10] sm:$0xf] %v376
    // Predicated region
    $region46: #{tpu_custom_call.1} parent=1 // pred_check
      _
    $region47: #{tpu_custom_call.1} parent=1 // pred_check_branch
      %379 = sbr.rel (0) target = $region49
    $region48: #{tpu_custom_call.1} parent=1 // pred_region
      %s381 = ssub.s32 64, 64
      %382 = vsyncadd [#allocation4], %s381
      %s384 = sshll.u32 [#allocation10], 4
      %s385 = int_to_ptr.vmem [resolvable:$true] %s384
      %387 = dma.vmem_to_hbm [thread:$0]  %s385, 64, %s7, [#allocation4]
    $region49: #{tpu_custom_call.1} parent=1 // pred_fallthru
      _
    // Predicated region
    $region50: #{tpu_custom_call.1} parent=1 // pred_check
      _
    $region51: #{tpu_custom_call.1} parent=1 // pred_check_branch
      %389 = sbr.rel (0) target = $region53
    $region52: #{tpu_custom_call.1} parent=1 // pred_region
      %390 = dma.done [#allocation4], 64
    $region53: #{tpu_custom_call.1} parent=1 // pred_fallthru
      _
    %391 = vsyncpa [#allocation3], 1
    %392 = vsyncpa [#allocation6], 1
    %393 = vsyncpa [#allocation9], 1
    %394 = vsyncpa [#allocation4], 1

</llo_original>
